<compile_context>
chip_gen: v7x
topology: tpu7x:2x2x1
jax: 0.10.0
libtpu: 0.0.40
codegen_flags: <defaults>
</compile_context>

<pallas_src>
import math

import jax
import jax.numpy as jnp
from jax import lax
from jax.experimental import pallas as pl
from jax.experimental.pallas import tpu as pltpu

_VMEM_LIMIT = 32 * 1024 * 1024  # explicit scoped-VMEM limit, safe on v5e/v6e/v7x


def _cparams(semantics):
    return pltpu.CompilerParams(dimension_semantics=semantics,
                                vmem_limit_bytes=_VMEM_LIMIT)


# --------------------------------------------------------------------------
# Kernel 1: 1x1 lateral conv (+ReLU), channels-first, HW on lanes.
# --------------------------------------------------------------------------

def _make_lateral_kernel(relu):
    def kernel(x_ref, w_ref, b_ref, o_ref):
        y = jnp.dot(w_ref[...], x_ref[0],
                    preferred_element_type=jnp.float32) + b_ref[...]
        if relu:
            y = jnp.maximum(y, 0.0)
        o_ref[0] = y.astype(o_ref.dtype)
    return kernel


def lateral_conv(x, w, b, relu=True):
    """x: (N, Cin, HW) bf16; w: (Cout, Cin) bf16; b: (Cout, 1) f32 -> (N, Cout, HW) bf16."""
    N, Ci, HW = x.shape
    C = w.shape[0]
    thw = HW
    if HW > 4096 and HW % 2048 == 0:      # tile huge images (lane dim stays x128)
        thw = 2048
    nt = HW // thw
    return pl.pallas_call(
        _make_lateral_kernel(relu),
        out_shape=jax.ShapeDtypeStruct((N, C, HW), jnp.bfloat16),
        grid_spec=pltpu.PrefetchScalarGridSpec(
            num_scalar_prefetch=0,
            grid=(N, nt),
            in_specs=[
                pl.BlockSpec((1, Ci, thw), lambda n, j: (n, 0, j)),
                pl.BlockSpec((C, Ci), lambda n, j: (0, 0)),
                pl.BlockSpec((C, 1), lambda n, j: (0, 0)),
            ],
            out_specs=pl.BlockSpec((1, C, thw), lambda n, j: (n, 0, j)),
        ),
        compiler_params=_cparams(("parallel", "parallel")),
    )(x, w, b)


# --------------------------------------------------------------------------
# Kernel 2: separable bilinear x2 upsample (align_corners=True).
#   W-step: (C*Hh, Wh) @ AwT  -> (C*Hh, Wl)   (one MXU matmul)
#   H-step: per channel Ah @ (Hh, Wl) -> (Hl, Wl)
# --------------------------------------------------------------------------

def _make_upsample_kernel(C, Hh):
    def kernel(h_ref, ah_ref, awT_ref, o_ref):
        s = jnp.dot(h_ref[0], awT_ref[...],
                    preferred_element_type=jnp.float32)       # (C*Hh, Wl)
        s16 = s.astype(jnp.bfloat16)
        for c in range(C):
            u = jnp.dot(ah_ref[...], s16[c * Hh:(c + 1) * Hh, :],
                        preferred_element_type=jnp.float32)   # (Hl, Wl)
            o_ref[0, c] = u.astype(o_ref.dtype)
    return kernel


def upsample2x(high_rows, ah, awT, C, Hh, Wh):
    """high_rows: (N, C*Hh, Wh) bf16; ah: (2Hh, Hh); awT: (Wh, 2Wh) -> (N, C, 2Hh, 2Wh)."""
    N = high_rows.shape[0]
    Hl, Wl = 2 * Hh, 2 * Wh
    return pl.pallas_call(
        _make_upsample_kernel(C, Hh),
        out_shape=jax.ShapeDtypeStruct((N, C, Hl, Wl), jnp.bfloat16),
        grid_spec=pltpu.PrefetchScalarGridSpec(
            num_scalar_prefetch=0,
            grid=(N,),
            in_specs=[
                pl.BlockSpec((1, C * Hh, Wh), lambda n: (n, 0, 0)),
                pl.BlockSpec((Hl, Hh), lambda n: (0, 0)),
                pl.BlockSpec((Wh, Wl), lambda n: (0, 0)),
            ],
            out_specs=pl.BlockSpec((1, C, Hl, Wl), lambda n: (n, 0, 0, 0)),
        ),
        compiler_params=_cparams(("parallel",)),
    )(high_rows, ah, awT)


# --------------------------------------------------------------------------
# Kernel 3 (the per-level fused kernel):
#   low = relu(W_lat @ x_low + b_lat)                      (lateral 1x1)
#   t   = relu(Wf_low @ low + Wf_up @ up + b_f)            (fuse 1x1 on concat)
#   y   = relu(conv3x3(t, pad=1) + b3)                     (fpn conv)
# The 3x3 uses a zero-padded flat VMEM scratch of row-stride W+2; each of the
# 9 taps is one big (C, C) @ (C, H*(W+2)) matmul on a contiguous slab, the two
# halo lanes per row are garbage and simply never extracted.
# --------------------------------------------------------------------------

def _make_fuse_fpn_kernel(C, H, W, relu):
    Wp = W + 2
    PAD = (H + 2) * Wp + 2   # +2 so the (dy=+1,dx=+1) slab stays in-bounds

    def kernel(x_ref, up_ref, wlat_ref, blat_ref, wfl_ref, wfu_ref, bf_ref,
               w3_ref, b3_ref, o_ref, tp_ref):
        # ---- lateral 1x1 on the low-level raw input ----
        low = jnp.dot(wlat_ref[...], x_ref[0],
                      preferred_element_type=jnp.float32) + blat_ref[...]
        if relu:
            low = jnp.maximum(low, 0.0)

        # ---- fuse 1x1 over concat([low, up], channel) as split-weight matmuls ----
        t = (jnp.dot(wfl_ref[...], low.astype(jnp.bfloat16),
                     preferred_element_type=jnp.float32)
             + jnp.dot(wfu_ref[...], up_ref[0],
                       preferred_element_type=jnp.float32)
             + bf_ref[...])
        if relu:
            t = jnp.maximum(t, 0.0)
        t16 = t.astype(jnp.bfloat16)

        # ---- scatter t into the zero-padded (pad=1) flat scratch ----
        tp_ref[...] = jnp.zeros((C, PAD), jnp.bfloat16)
        for y in range(H):
            dst = (y + 1) * Wp + 1
            tp_ref[:, dst:dst + W] = t16[:, y * W:(y + 1) * W]

        # ---- 3x3 conv: 9 taps, each one contiguous-slab MXU matmul ----
        acc = jnp.zeros((C, H * Wp), jnp.float32)
        for dy in (-1, 0, 1):
            for dx in (-1, 0, 1):
                tap = (dy + 1) * 3 + (dx + 1)
                start = (1 + dy) * Wp + (1 + dx)
                slab = tp_ref[:, start:start + H * Wp]          # (C, H*Wp) bf16
                acc = acc + jnp.dot(w3_ref[tap], slab,
                                    preferred_element_type=jnp.float32)
        acc = acc + b3_ref[...]
        if relu:
            acc = jnp.maximum(acc, 0.0)
        y16 = acc.astype(o_ref.dtype)

        # ---- compact the padded-width accumulator into the dense output ----
        for y in range(H):
            o_ref[0, :, y * W:(y + 1) * W] = y16[:, y * Wp:y * Wp + W]

    return kernel


def fuse_fpn_level(x_low, up, w_lat, b_lat, w_fl, w_fu, b_f, w3, b3,
                   H, W, relu=True):
    """x_low: (N, Clow, HW) bf16; up: (N, C, HW) bf16 -> (N, C, HW) bf16."""
    N, Clow, HW = x_low.shape
    C = w_lat.shape[0]
    assert HW == H * W
    return pl.pallas_call(
        _make_fuse_fpn_kernel(C, H, W, relu),
        out_shape=jax.ShapeDtypeStruct((N, C, HW), jnp.bfloat16),
        grid_spec=pltpu.PrefetchScalarGridSpec(
            num_scalar_prefetch=0,
            grid=(N,),
            in_specs=[
                pl.BlockSpec((1, Clow, HW), lambda n: (n, 0, 0)),
                pl.BlockSpec((1, C, HW), lambda n: (n, 0, 0)),
                pl.BlockSpec((C, Clow), lambda n: (0, 0)),
                pl.BlockSpec((C, 1), lambda n: (0, 0)),
                pl.BlockSpec((C, C), lambda n: (0, 0)),
                pl.BlockSpec((C, C), lambda n: (0, 0)),
                pl.BlockSpec((C, 1), lambda n: (0, 0)),
                pl.BlockSpec((9, C, C), lambda n: (0, 0, 0)),
                pl.BlockSpec((C, 1), lambda n: (0, 0)),
            ],
            out_specs=pl.BlockSpec((1, C, HW), lambda n: (n, 0, 0)),
            scratch_shapes=[pltpu.VMEM((C, (H + 2) * (W + 2) + 2), jnp.bfloat16)],
        ),
        compiler_params=_cparams(("parallel",)),
    )(x_low, up, w_lat, b_lat, w_fl, w_fu, b_f, w3, b3)


# --------------------------------------------------------------------------
# Glue: parameters, interpolation matrices, forward pass
# --------------------------------------------------------------------------

def _interp_matrix(n_in):
    """(2*n_in, n_in) bilinear x2 interpolation matrix, align_corners=True."""
    n_out = 2 * n_in
    rows = []
    for o in range(n_out):
        src = o * (n_in - 1) / (n_out - 1) if n_out > 1 else 0.0
        i0 = min(int(math.floor(src)), n_in - 1)
        i1 = min(i0 + 1, n_in - 1)
        f = src - i0
        row = [0.0] * n_in
        row[i0] += 1.0 - f
        row[i1] += f
        rows.append(row)
    return jnp.asarray(rows, jnp.float32)


def make_params(key, in_channels, out_channels):
    """Synthetic params.  1x1 weights stored (Cout, Cin); 3x3 stored (9, Cout, Cin)."""
    C = out_channels
    keys = iter(jax.random.split(key, 8 * len(in_channels) + 8))
    lateral, fuse, fpn = [], [], []
    for ci in in_channels:
        w = jax.random.normal(next(keys), (C, ci), jnp.float32) / math.sqrt(ci)
        b = jax.random.normal(next(keys), (C,), jnp.float32) * 0.01
        lateral.append((w, b))
    for _ in range(1, len(in_channels)):
        wf = jax.random.normal(next(keys), (C, 2 * C), jnp.float32) / math.sqrt(2 * C)
        bf = jax.random.normal(next(keys), (C,), jnp.float32) * 0.01
        fuse.append((wf, bf))
        w3 = jax.random.normal(next(keys), (9, C, C), jnp.float32) / math.sqrt(9 * C)
        b3 = jax.random.normal(next(keys), (C,), jnp.float32) * 0.01
        fpn.append((w3, b3))
    return {"lateral": lateral, "fuse": fuse, "fpn": fpn}


def efficient_fpn_forward(params, inputs, out_channels, with_relu=True):
    """inputs: list of (B, V, Ci, Hi, Wi) arrays.  Returns (B, V, out_channels, H0, W0)."""
    L = len(inputs)
    assert L == len(params["lateral"])
    B, V = inputs[0].shape[:2]
    N = B * V
    C = out_channels
    spatial = [(int(x.shape[3]), int(x.shape[4])) for x in inputs]

    # Free reshape to channels-first flat layout + bf16 for MXU / HBM bytes.
    xs = [x.reshape(N, x.shape[2], x.shape[3] * x.shape[4]).astype(jnp.bfloat16)
          for x in inputs]

    lat_w = [w.astype(jnp.bfloat16) for (w, _) in params["lateral"]]
    lat_b = [b.reshape(C, 1).astype(jnp.float32) for (_, b) in params["lateral"]]

    # Only the top level needs a standalone lateral conv; every other level's
    # lateral 1x1 is fused into that level's fuse+3x3 kernel.
    high = lateral_conv(xs[-1], lat_w[-1], lat_b[-1], relu=with_relu)  # (N, C, HW_top)

    for i in range(L - 1, 0, -1):
        Hh, Wh = spatial[i]
        Hl, Wl = spatial[i - 1]
        assert Hl == 2 * Hh and Wl == 2 * Wh
        ah = _interp_matrix(Hh).astype(jnp.bfloat16)       # (Hl, Hh)
        awT = _interp_matrix(Wh).T.astype(jnp.bfloat16)    # (Wh, Wl)

        up = upsample2x(high.reshape(N, C * Hh, Wh), ah, awT, C, Hh, Wh)
        up = up.reshape(N, C, Hl * Wl)                     # free reshape

        wf, bf = params["fuse"][i - 1]
        w3, b3 = params["fpn"][i - 1]
        high = fuse_fpn_level(
            xs[i - 1], up,
            lat_w[i - 1], lat_b[i - 1],
            wf[:, :C].astype(jnp.bfloat16), wf[:, C:].astype(jnp.bfloat16),
            bf.reshape(C, 1).astype(jnp.float32),
            w3.astype(jnp.bfloat16), b3.reshape(C, 1).astype(jnp.float32),
            Hl, Wl, relu=with_relu)                        # (N, C, Hl*Wl)

    H0, W0 = spatial[0]
    return high.reshape(B, V, C, H0, W0).astype(jnp.float32)


# --------------------------------------------------------------------------
# Pure-JAX reference (f32, HIGHEST precision) for correctness check
# --------------------------------------------------------------------------

def reference_forward(params, inputs, out_channels, with_relu=True):
    L = len(inputs)
    B, V = inputs[0].shape[:2]
    N = B * V
    C = out_channels
    act = (lambda v: jnp.maximum(v, 0.0)) if with_relu else (lambda v: v)
    xs = [x.reshape(N, *x.shape[2:]) for x in inputs]
    lats = []
    for i, x in enumerate(xs):
        w, b = params["lateral"][i]
        y = jnp.einsum('oc,nchw->nohw', w, x, precision=lax.Precision.HIGHEST)
        lats.append(act(y + b[None, :, None, None]))
    for i in range(L - 1, 0, -1):
        Hh, Wh = lats[i].shape[2:]
        ah, aw = _interp_matrix(Hh), _interp_matrix(Wh)
        up = jnp.einsum('yh,nchw,xw->ncyx', ah, lats[i], aw,
                        precision=lax.Precision.HIGHEST)
        cat = jnp.concatenate([lats[i - 1], up], axis=1)
        wf, bf = params["fuse"][i - 1]
        t = act(jnp.einsum('oc,nchw->nohw', wf, cat,
                           precision=lax.Precision.HIGHEST) + bf[None, :, None, None])
        w3, b3 = params["fpn"][i - 1]
        w_oihw = w3.reshape(3, 3, C, C).transpose(2, 3, 0, 1)
        y = lax.conv_general_dilated(t, w_oihw, (1, 1), ((1, 1), (1, 1)),
                                     dimension_numbers=('NCHW', 'OIHW', 'NCHW'),
                                     precision=lax.Precision.HIGHEST)
        lats[i - 1] = act(y + b3[None, :, None, None])
    H0, W0 = lats[0].shape[2:]
    return lats[0].reshape(B, V, C, H0, W0)


# --------------------------------------------------------------------------

if __name__ == "__main__":
    key = jax.random.PRNGKey(0)
    in_channels = [4, 8, 16]
    out_channels = 8
    B, V = 2, 2
    H0 = W0 = 16

    keys = jax.random.split(key, 1 + len(in_channels))
    params = make_params(keys[0], in_channels, out_channels)
    inputs = []
    for i, ci in enumerate(in_channels):
        h = H0 >> i
        inputs.append(jax.random.normal(keys[1 + i], (B, V, ci, h, h), jnp.float32))

    out = efficient_fpn_forward(params, inputs, out_channels, with_relu=True)
    out = jax.block_until_ready(out)
    assert out.shape == (B, V, out_channels, H0, W0)

    ref = reference_forward(params, inputs, out_channels, with_relu=True)
    err = float(jnp.max(jnp.abs(out - ref)))
    scale = float(jnp.max(jnp.abs(ref))) + 1.0
    # bf16 MXU inputs / bf16 intermediates with f32 accumulation -> 2e-2 tolerance.
    if err > 2e-2 * scale:
        raise AssertionError(f"kernel/reference mismatch: max abs err = {err}")

    print("KERNEL_OK")
</pallas_src>

<mosaic_0001>
module attributes {stable_mosaic.version = 11 : i64} {
  func.func @kernel(%arg0: i32, %arg1: i32, %arg2: memref<1x16x16xbf16, #tpu.memory_space<vmem>>, %arg3: memref<8x16xbf16, #tpu.memory_space<vmem>>, %arg4: memref<8x1xf32, #tpu.memory_space<vmem>>, %arg5: memref<1x8x16xbf16, #tpu.memory_space<vmem>>) attributes {dimension_semantics = [#tpu.dimension_semantics<parallel>, #tpu.dimension_semantics<parallel>], iteration_bounds = array<i64: 4, 1>, scalar_prefetch = 0 : i64, scratch_operands = 0 : i64, tpu.core_type = #tpu.core_type<tc>, window_params = [{transform_indices = @transform_0, window_bounds = array<i64: 1, 16, 16>}, {pipeline_mode = #tpu.pipeline_mode<synchronous>, transform_indices = @transform_1, window_bounds = array<i64: 8, 16>}, {pipeline_mode = #tpu.pipeline_mode<synchronous>, transform_indices = @transform_2, window_bounds = array<i64: 8, 1>}, {transform_indices = @transform_3, window_bounds = array<i64: 1, 8, 16>}]} {
    %c0 = arith.constant 0 : index
    %c0_0 = arith.constant 0 : index
    %0 = vector.load %arg3[%c0, %c0_0] : memref<8x16xbf16, #tpu.memory_space<vmem>>, vector<8x16xbf16>
    %c0_1 = arith.constant 0 : index
    %c0_2 = arith.constant 0 : index
    %c0_3 = arith.constant 0 : index
    %1 = vector.load %arg2[%c0_1, %c0_2, %c0_3] : memref<1x16x16xbf16, #tpu.memory_space<vmem>>, vector<1x16x16xbf16>
    %2 = vector.shape_cast %1 : vector<1x16x16xbf16> to vector<16x16xbf16>
    %cst = arith.constant dense<0.000000e+00> : vector<8x16xf32>
    %3 = tpu.matmul %0, %2, %cst {dimension_numbers = #tpu.dot_dimension_numbers<[1], [0], [0], [1], [0, 0, 1, 1], [], []>} : vector<8x16xbf16>, vector<16x16xbf16>, vector<8x16xf32> -> vector<8x16xf32>
    %c0_4 = arith.constant 0 : index
    %c0_5 = arith.constant 0 : index
    %4 = vector.load %arg4[%c0_4, %c0_5] : memref<8x1xf32, #tpu.memory_space<vmem>>, vector<8x1xf32>
    %5 = vector.broadcast %4 : vector<8x1xf32> to vector<8x16xf32>
    %6 = arith.addf %3, %5 : vector<8x16xf32>
    %cst_6 = arith.constant 0.000000e+00 : f32
    %7 = vector.broadcast %cst_6 : f32 to vector<8x16xf32>
    %8 = arith.maximumf %6, %7 : vector<8x16xf32>
    %9 = arith.truncf %8 : vector<8x16xf32> to vector<8x16xbf16>
    %c0_7 = arith.constant 0 : index
    %c0_8 = arith.constant 0 : index
    %c0_9 = arith.constant 0 : index
    %10 = vector.load %arg5[%c0_7, %c0_8, %c0_9] : memref<1x8x16xbf16, #tpu.memory_space<vmem>>, vector<1x8x16xbf16>
    %11 = vector.shape_cast %10 : vector<1x8x16xbf16> to vector<8x16xbf16>
    %12 = vector.shape_cast %9 : vector<8x16xbf16> to vector<1x8x16xbf16>
    tpu.vector_store %arg5[%c0_7, %c0_8, %c0_9], %12 {strides = array<i32>} : memref<1x8x16xbf16, #tpu.memory_space<vmem>>, vector<1x8x16xbf16>,
    return
  }
  func.func @transform_0(%arg0: i32, %arg1: i32) -> (i32, i32, i32) {
    %c0_i32 = arith.constant 0 : i32
    %c0_i32_0 = arith.constant 0 : i32
    return %arg0, %c0_i32, %arg1 : i32, i32, i32
  }
  func.func @transform_1(%arg0: i32, %arg1: i32) -> (i32, i32) {
    %c0_i32 = arith.constant 0 : i32
    %c0_i32_0 = arith.constant 0 : i32
    %c0_i32_1 = arith.constant 0 : i32
    return %c0_i32, %c0_i32_0 : i32, i32
  }
  func.func @transform_2(%arg0: i32, %arg1: i32) -> (i32, i32) {
    %c0_i32 = arith.constant 0 : i32
    %c0_i32_0 = arith.constant 0 : i32
    %c0_i32_1 = arith.constant 0 : i32
    return %c0_i32, %c0_i32_0 : i32, i32
  }
  func.func @transform_3(%arg0: i32, %arg1: i32) -> (i32, i32, i32) {
    %c0_i32 = arith.constant 0 : i32
    %c0_i32_0 = arith.constant 0 : i32
    return %arg0, %c0_i32, %arg1 : i32, i32, i32
  }
}

</mosaic_0001>

<llo_original>
// kernel: tpu_custom_call.1
$region0: #{tpu_custom_call.1}
  #allocation0 [shape = 'u32[]', space=smem, size = 0x4, offset = 0x4, fixed_abs, tag = 'smem constant byte address 0x4 - core index']
  #allocation1 [shape = 'u32[144,128]{1,0:T(1,128)}', space=vmem, size = 0x12000, scoped, tag = 'internal scratch']
  %s0 = inlined_call_operand.hbm [shape: bf16[4,16,16], index: 0, kind: input, shape index: {}]
  %s1 = inlined_call_operand.vmem [shape: bf16[8,16], index: 1, kind: input, shape index: {}]
  %s2 = inlined_call_operand.vmem [shape: f32[8,1], index: 2, kind: input, shape index: {}]
  %s3 = inlined_call_operand.hbm [shape: bf16[4,8,16], index: 3, kind: output, shape index: {}]
  %s4 = sld [smem:[#allocation0]]
  $region49: #{tpu_custom_call.1} parent=0
    _
  %s6 = ssub.s32 1, %s4
  %s7 = scalar_select 0, %s6, %s4
  $region1: #{tpu_custom_call.1} parent=0
    #allocation2 [shape = 'u8[8192]{0}', space=vmem, size = 0x2000, scoped, tag = 'input window, operand 0']
    #allocation3 [shape = 's32[2]{0}', space=sflag, size = 0x8, scoped, tag = 'scoped memory for tpu_custom_call.1']
    #allocation4 [shape = 's32[2]{0}', space=sflag, size = 0x8, scoped, tag = 'scoped memory for tpu_custom_call.1']
    #allocation5 [shape = 'u8[4096]{0}', space=vmem, size = 0x1000, scoped, tag = 'output window, operand 0']
    %8 = vsyncpa [#allocation3], 0
    %s9 = scalar_lea.sflag [#allocation3], 1
    %10 = vsyncpa %s9, 0
    %11 = vsyncpa [#allocation4], 0
    %s12 = scalar_lea.sflag [#allocation4], 1
    %13 = vsyncpa %s12, 0
    loop: start=0, step=1, limit=6
    $region2: #{tpu_custom_call.1} parent=1 // loop_pre_header
      _
    $region3: #{tpu_custom_call.1} parent=1 // loop_header
      %s15 = sphi 0, %s19
      %p16 = scmp.ge.s32.totalorder %s15, 6
      %s22 = sphi 0, %s34
      %s23 = sphi 0, %s30
      %s24 = sphi 0, %s22
      %s25 = sphi 0, %s23
      %s26 = sphi 0, %s24
      %s27 = sphi 0, %s25
      %s39 = sphi 0, %s41
      %s42 = sphi 0, %s39
      %s43 = sphi 0, %s42
      %s59 = sphi 0, %s43
      %s63 = sphi 0, %s63
      %s65 = sphi 0, %s63
      %s66 = sphi 0, %s65
      %s80 = sphi 0, %s66
      %s84 = sphi 0, %s84
      %s86 = sphi 0, %s84
      %s87 = sphi 0, %s86
      %s101 = sphi 0, %s87
      %s109 = sphi 0, %s111
      %s112 = sphi 0, %s109
      %s113 = sphi 0, %s112
      %s129 = sphi 0, %s113
    $region4: #{tpu_custom_call.1} parent=1 // loop_header_branch
      %18 = sbr.rel (%p16) target = $region8
    $region5: #{tpu_custom_call.1} parent=1 // loop_body
      %s20 = ssub.s32 %s15, 1
      %s21 = ssub.s32 %s15, 2
      %s28 = sadd.s32 1, %s23
      %p29 = scmp.ge.s32.totalorder %s28, 1
      %s30 = scalar_select %p29, 0, %s28
      %s31 = sadd.s32 1, %s22
      %s32 = scalar_select %p29, %s31, %s22
      %p33 = scmp.ge.s32.totalorder %s32, 4
      %s34 = scalar_select %p33, 0, %s32
      %s35 = ssub.s32 %s22, %s34
      %s36 = ssub.s32 %s23, %s30
      %s37 = sor.u32 %s35, %s36
      %p38 = scmp.eq.s32.totalorder %s37, 0
      %s40 = sadd.s32 %s39, 1
      %s41 = scalar_select %p38, %s39, %s40
      %p44 = pneg %p38
      %p45 = scmp.eq.s32.totalorder %s15, 3
      %p46 = por %p44, %p45
      %p47 = scmp.ne.s32.totalorder %s39, %s42
      %p48 = scmp.eq.s32.totalorder %s15, 0
      %p49 = por %p47, %p48
      %p50 = scmp.ne.s32.totalorder %s39, %s42
      %p51 = scmp.eq.s32.totalorder %s20, 3
      %p52 = por %p50, %p51
      %p53 = scmp.ne.s32.totalorder %s42, %s43
      %p54 = scmp.eq.s32.totalorder %s20, 0
      %p55 = por %p53, %p54
      %p56 = scmp.ne.s32.totalorder %s42, %s43
      %p57 = scmp.eq.s32.totalorder %s21, 3
      %p58 = por %p56, %p57
      %p60 = scmp.ne.s32.totalorder %s43, %s59
      %p61 = scmp.eq.s32.totalorder %s21, 0
      %p62 = por %p60, %p61
      %s64 = sadd.s32 %s63, 1
      %p67 = scmp.eq.s32.totalorder %s15, 3
      %p68 = scmp.ne.s32.totalorder %s63, %s65
      %p69 = scmp.eq.s32.totalorder %s15, 0
      %p70 = por %p68, %p69
      %p71 = scmp.ne.s32.totalorder %s63, %s65
      %p72 = scmp.eq.s32.totalorder %s20, 3
      %p73 = por %p71, %p72
      %p74 = scmp.ne.s32.totalorder %s65, %s66
      %p75 = scmp.eq.s32.totalorder %s20, 0
      %p76 = por %p74, %p75
      %p77 = scmp.ne.s32.totalorder %s65, %s66
      %p78 = scmp.eq.s32.totalorder %s21, 3
      %p79 = por %p77, %p78
      %p81 = scmp.ne.s32.totalorder %s66, %s80
      %p82 = scmp.eq.s32.totalorder %s21, 0
      %p83 = por %p81, %p82
      %s85 = sadd.s32 %s84, 1
      %p88 = scmp.eq.s32.totalorder %s15, 3
      %p89 = scmp.ne.s32.totalorder %s84, %s86
      %p90 = scmp.eq.s32.totalorder %s15, 0
      %p91 = por %p89, %p90
      %p92 = scmp.ne.s32.totalorder %s84, %s86
      %p93 = scmp.eq.s32.totalorder %s20, 3
      %p94 = por %p92, %p93
      %p95 = scmp.ne.s32.totalorder %s86, %s87
      %p96 = scmp.eq.s32.totalorder %s20, 0
      %p97 = por %p95, %p96
      %p98 = scmp.ne.s32.totalorder %s86, %s87
      %p99 = scmp.eq.s32.totalorder %s21, 3
      %p100 = por %p98, %p99
      %p102 = scmp.ne.s32.totalorder %s87, %s101
      %p103 = scmp.eq.s32.totalorder %s21, 0
      %p104 = por %p102, %p103
      %s105 = ssub.s32 %s22, %s34
      %s106 = ssub.s32 %s23, %s30
      %s107 = sor.u32 %s105, %s106
      %p108 = scmp.eq.s32.totalorder %s107, 0
      %s110 = sadd.s32 %s109, 1
      %s111 = scalar_select %p108, %s109, %s110
      %p114 = pneg %p108
      %p115 = scmp.eq.s32.totalorder %s15, 3
      %p116 = por %p114, %p115
      %p117 = scmp.ne.s32.totalorder %s109, %s112
      %p118 = scmp.eq.s32.totalorder %s15, 0
      %p119 = por %p117, %p118
      %p120 = scmp.ne.s32.totalorder %s109, %s112
      %p121 = scmp.eq.s32.totalorder %s20, 3
      %p122 = por %p120, %p121
      %p123 = scmp.ne.s32.totalorder %s112, %s113
      %p124 = scmp.eq.s32.totalorder %s20, 0
      %p125 = por %p123, %p124
      %p126 = scmp.ne.s32.totalorder %s112, %s113
      %p127 = scmp.eq.s32.totalorder %s21, 3
      %p128 = por %p126, %p127
      %p130 = scmp.ne.s32.totalorder %s113, %s129
      %p131 = scmp.eq.s32.totalorder %s21, 0
      %p132 = por %p130, %p131
      %p133 = scmp.le.s32.totalorder 1, %s15
      %p134 = scmp.lt.s32.totalorder %s15, 5
      %p135 = pnand %p133, %p134
      %p136 = pneg %p135
      // Predicated region
      $region9: #{tpu_custom_call.1} parent=5 // pred_check
        _
      $region10: #{tpu_custom_call.1} parent=5 // pred_check_branch
        %138 = sbr.rel (%p135) target = $region12
      $region11: #{tpu_custom_call.1} parent=5 // pred_region
        %s139 = ssub.s32 %s15, 1
        // Predicated region
        $region13: #{tpu_custom_call.1} parent=11 // pred_check
          %p140 = pneg %p76
        $region14: #{tpu_custom_call.1} parent=11 // pred_check_branch
          %142 = sbr.rel (%p140) target = $region16
        $region15: #{tpu_custom_call.1} parent=11 // pred_region
          _
        $region16: #{tpu_custom_call.1} parent=11 // pred_fallthru
          _
        // Predicated region
        $region17: #{tpu_custom_call.1} parent=11 // pred_check
          %p143 = pneg %p97
        $region18: #{tpu_custom_call.1} parent=11 // pred_check_branch
          %145 = sbr.rel (%p143) target = $region20
        $region19: #{tpu_custom_call.1} parent=11 // pred_region
          _
        $region20: #{tpu_custom_call.1} parent=11 // pred_fallthru
          _
      $region12: #{tpu_custom_call.1} parent=5 // pred_fallthru
        _
      %p146 = scmp.lt.s32.totalorder %s15, 4
      // Predicated region
      $region21: #{tpu_custom_call.1} parent=5 // pred_check
        %p147 = pneg %p146
      $region22: #{tpu_custom_call.1} parent=5 // pred_check_branch
        %149 = sbr.rel (%p147) target = $region24
      $region23: #{tpu_custom_call.1} parent=5 // pred_region
        // Predicated region
        $region25: #{tpu_custom_call.1} parent=23 // pred_check
          %p150 = pneg %p49
        $region26: #{tpu_custom_call.1} parent=23 // pred_check_branch
          %152 = sbr.rel (%p150) target = $region28
        $region27: #{tpu_custom_call.1} parent=23 // pred_region
          %s153 = sand.u32 %s39, 1
          %s154 = scalar_lea.sflag [#allocation3], %s153
          %s155 = sand.u32 %s39, 1
          %s156 = smul.addr %s155, 8
          %s157 = scalar_lea.vmem [#allocation2], %s156
          %s159 = ssub.s32 128, 128
          %160 = vsyncadd %s154, %s159
          %s161 = smul.addr %s22, 2
          %s162 = sadd.s32 %s23, %s161
          %s163 = smul.addr %s162, 64
          %s164 = scalar_lea.hbm %s0, %s163
          %s165 = sshll.u32 %s157, 4
          %s166 = int_to_ptr.vmem [resolvable:$true] %s165
          %171 = dma.hbm_to_vmem [thread:$0]  %s164, 128, %s166, %s154, 64, 64, 4
        $region28: #{tpu_custom_call.1} parent=23 // pred_fallthru
          _
      $region24: #{tpu_custom_call.1} parent=5 // pred_fallthru
        _
      %p172 = scmp.le.s32.totalorder 1, %s15
      %p173 = scmp.lt.s32.totalorder %s15, 5
      %p174 = pnand %p172, %p173
      %p175 = pneg %p174
      // Predicated region
      $region29: #{tpu_custom_call.1} parent=5 // pred_check
        _
      $region30: #{tpu_custom_call.1} parent=5 // pred_check_branch
        %177 = sbr.rel (%p174) target = $region32
      $region31: #{tpu_custom_call.1} parent=5 // pred_region
        %s178 = ssub.s32 %s15, 1
        %s179 = sand.u32 %s42, 1
        %s180 = scalar_lea.sflag [#allocation3], %s179
        %s181 = sand.u32 %s42, 1
        %s182 = smul.addr %s181, 8
        %s183 = scalar_lea.vmem [#allocation2], %s182
        // Predicated region
        $region33: #{tpu_custom_call.1} parent=31 // pred_check
          %p184 = pneg %p55
        $region34: #{tpu_custom_call.1} parent=31 // pred_check_branch
          %186 = sbr.rel (%p184) target = $region36
        $region35: #{tpu_custom_call.1} parent=31 // pred_region
          %187 = dma.done %s180, 128
        $region36: #{tpu_custom_call.1} parent=31 // pred_fallthru
          _
        %s188 = sand.u32 %s42, 1
        %s189 = scalar_lea.sflag [#allocation3], %s188
        %s190 = sand.u32 %s42, 1
        %s191 = smul.addr %s190, 8
        %s192 = scalar_lea.vmem [#allocation2], %s191
        %p193 = pneg %p55
        %p194 = pneg %p52
        %p195 = pneg %p76
        %p196 = pneg %p73
        %p197 = pneg %p97
        %p198 = pneg %p94
        %p199 = pneg %p125
        %p200 = pneg %p122
        %s201 = sand.u32 %s112, 1
        %s202 = scalar_lea.sflag [#allocation4], %s201
        %s203 = sand.u32 %s112, 1
        %s204 = smul.addr %s203, 4
        %s205 = scalar_lea.vmem [#allocation5], %s204
        %v207 = vld [vmem:[%s1] sm:$0xf]
        %v208 = vld [vmem:[%s183] sm:$0xf]
        %v209 = vld [vmem:[%s183 + $0x4] sm:$0xf]
        %v210 = vld [vmem:[%s2] sm:$0xff]
        %212 = vset.pattern.permute.xlu0 0
        %213 = vperm.xlu0 %212, %v210
        %v214 = vpop.permute.xlu0 %213
        %v218 = vunpack.c.l.b16 %v208
        %v219 = vunpack.c.l.b16 %v209
        %v220 = vpack.c.b16 %v219, %v218
        %vm222 = vcmask 130048
        %v224 = vsel %vm222, %v207, 0
        %226 = vmatprep.subr.bf16.mxu0 0
        %227 = vmatpush1.bf16.msra.mxu0 %v220
        %228 = vmatprep.subr.bf16.mxu0 0
        %229 = vmatpush1.bf16.msra.mxu0 0
        %230 = vmatprep.subr.bf16.mxu0 0
        %231 = vmatpush1.bf16.msra.mxu0 0
        %232 = vmatprep.subr.bf16.mxu0 0
        %233 = vmatpush1.bf16.msra.mxu0 0
        %234 = vmatprep.subr.bf16.mxu0 0
        %235 = vmatpush1.bf16.msra.mxu0 0
        %236 = vmatprep.subr.bf16.mxu0 0
        %237 = vmatpush1.bf16.msra.mxu0 0
        %238 = vmatprep.subr.bf16.mxu0 0
        %239 = vmatpush1.bf16.msra.mxu0 0
        %240 = vmatprep.subr.bf16.mxu0 0
        %241 = vmatpush1.bf16.msra.mxu0 0
        %242 = vmatprep.subr.bf16.mxu0 0
        %243 = vmatpush1.bf16.msra.mxu0 0
        %244 = vmatprep.subr.bf16.mxu0 0
        %245 = vmatpush1.bf16.msra.mxu0 0
        %246 = vmatprep.subr.bf16.mxu0 0
        %247 = vmatpush1.bf16.msra.mxu0 0
        %248 = vmatprep.subr.bf16.mxu0 0
        %249 = vmatpush1.bf16.msra.mxu0 0
        %250 = vmatprep.subr.bf16.mxu0 0
        %251 = vmatpush1.bf16.msra.mxu0 0
        %252 = vmatprep.subr.bf16.mxu0 0
        %253 = vmatpush1.bf16.msra.mxu0 0
        %254 = vmatprep.subr.bf16.mxu0 0
        %255 = vmatpush1.bf16.msra.mxu0 0
        %256 = vmatprep.subr.bf16.mxu0 0
        %257 = vmatpush1.bf16.msra.mxu0 0
        %258 = vmatprep.mubr.bf16.mxu0 0
        %259 = vmatmul.mubr.bf16.gmra.mrb[0].mxu0 %v224
        %v260 = vpop.f32.mrb[0].mxu0
        %v261 = vadd.f32 %v214, %v260
        %v262 = vpop.f32.mrb[0].mxu0
        %v263 = vpop.f32.mrb[0].mxu0
        %v264 = vpop.f32.mrb[0].mxu0
        %265 = vdwg.mxu0
        %v266 = vmax.f32 %v261, 0.0
        %v267 = vpack.c.bf16 %v266, %v266
        %vm268 = vcmask 125952
        %269 = vst.msk [vmem:[%s205] sm:$0xf] %vm268, %v267
        %s270 = sand.u32 %s112, 1
        %s271 = scalar_lea.sflag [#allocation4], %s270
        %s272 = sand.u32 %s112, 1
        %s273 = smul.addr %s272, 4
        %s274 = scalar_lea.vmem [#allocation5], %s273
        // Predicated region
        $region37: #{tpu_custom_call.1} parent=31 // pred_check
          %p275 = pneg %p122
        $region38: #{tpu_custom_call.1} parent=31 // pred_check_branch
          %277 = sbr.rel (%p275) target = $region40
        $region39: #{tpu_custom_call.1} parent=31 // pred_region
          %s279 = ssub.s32 64, 64
          %280 = vsyncadd %s271, %s279
          %s281 = sadd.s32 %s25, %s24
          %s282 = smul.addr %s281, 64
          %s283 = scalar_lea.hbm %s3, %s282
          %s285 = sshll.u32 %s274, 4
          %s286 = int_to_ptr.vmem [resolvable:$true] %s285
          %288 = dma.vmem_to_hbm [thread:$0]  %s286, 64, %s283, %s271
        $region40: #{tpu_custom_call.1} parent=31 // pred_fallthru
          _
      $region32: #{tpu_custom_call.1} parent=5 // pred_fallthru
        _
      %p289 = scmp.le.s32.totalorder 2, %s15
      // Predicated region
      $region41: #{tpu_custom_call.1} parent=5 // pred_check
        %p290 = pneg %p289
      $region42: #{tpu_custom_call.1} parent=5 // pred_check_branch
        %292 = sbr.rel (%p290) target = $region44
      $region43: #{tpu_custom_call.1} parent=5 // pred_region
        %s293 = ssub.s32 %s15, 2
        // Predicated region
        $region45: #{tpu_custom_call.1} parent=43 // pred_check
          %p294 = pneg %p128
        $region46: #{tpu_custom_call.1} parent=43 // pred_check_branch
          %296 = sbr.rel (%p294) target = $region48
        $region47: #{tpu_custom_call.1} parent=43 // pred_region
          %s297 = sand.u32 %s113, 1
          %s298 = scalar_lea.sflag [#allocation4], %s297
          %s299 = sand.u32 %s113, 1
          %s300 = smul.addr %s299, 4
          %s301 = scalar_lea.vmem [#allocation5], %s300
          %302 = dma.done %s298, 64
        $region48: #{tpu_custom_call.1} parent=43 // pred_fallthru
          _
      $region44: #{tpu_custom_call.1} parent=5 // pred_fallthru
        _
    $region6: #{tpu_custom_call.1} parent=1 // loop_footer
      %s19 = sadd.s32 1, %s15
    $region7: #{tpu_custom_call.1} parent=1 // loop_footer_branch
      %14 = sbr.rel target = $region3
    $region8: #{tpu_custom_call.1} parent=1 // loop_exit
      _
    %303 = vsyncpa [#allocation3], 1
    %s304 = scalar_lea.sflag [#allocation3], 1
    %305 = vsyncpa %s304, 1
    %306 = vsyncpa [#allocation4], 1
    %s307 = scalar_lea.sflag [#allocation4], 1
    %308 = vsyncpa %s307, 1

</llo_original>
